<compile_context>
chip_gen: v6e
topology: v6e:2x2x1
jax: 0.10.0
libtpu: 0.0.40
codegen_flags: <defaults>
</compile_context>

<pallas_src>
import math
import functools

import jax
import jax.numpy as jnp
from jax.experimental import pallas as pl
from jax.experimental.pallas import tpu as pltpu

_VMEM_LIMIT = 64 * 1024 * 1024   # explicit scoped-VMEM budget (safe on v5e/v6e/v7x)


# ----------------------------- tiling helpers -----------------------------

def _pick_tile(dim, target, align):
    """Largest divisor of `dim` that is a multiple of `align` and <= target.

    Small dims return the full dimension (full-extent blocks are always legal).
    Large dims with no aligned divisor fall back to the largest divisor
    <= target instead of the full array, so an awkward M can't blow VMEM."""
    if dim <= target:
        return dim
    if dim % align == 0:
        t = (target // align) * align
        while t >= align:
            if dim % t == 0:
                return t
            t -= align
    for t in range(target, 0, -1):
        if dim % t == 0:
            return t
    return dim


def _heads_per_block(num_heads, dh):
    """Pick heads-per-block so the attention block last dim (hpb*dh) is
    lane-dense (multiple of 128) or covers all heads (full-dim block)."""
    for cand in range(1, num_heads):
        if num_heads % cand == 0 and (cand * dh) % 128 == 0:
            return cand
    return num_heads


# ----------------------------- Pallas kernels -----------------------------

def _ln_matmul_kernel(x_ref, g_ref, b_ref, w_ref, bias_ref, o_ref, xn_sc, *, gelu):
    """Fused LayerNorm(x) @ W + b (+ optional GPT2 'gelu_new').

    LN is computed once per M row-tile (j == 0) and cached as bf16 in VMEM;
    every N tile matmuls from the cache (N axis is 'arbitrary')."""
    @pl.when(pl.program_id(1) == 0)
    def _():
        x = x_ref[...].astype(jnp.float32)                  # (tm, K)
        mu = jnp.mean(x, axis=-1, keepdims=True)
        var = jnp.mean(jnp.square(x - mu), axis=-1, keepdims=True)
        xn = (x - mu) * jax.lax.rsqrt(var + 1e-5)
        xn = xn * g_ref[...].astype(jnp.float32) + b_ref[...].astype(jnp.float32)
        xn_sc[...] = xn.astype(jnp.bfloat16)

    h = jnp.dot(xn_sc[...], w_ref[...],
                preferred_element_type=jnp.float32)          # MXU bf16 -> f32
    h = h + bias_ref[...].astype(jnp.float32)
    if gelu:
        h = 0.5 * h * (1.0 + jnp.tanh(
            0.7978845608028654 * (h + 0.044715 * h * h * h)))
    o_ref[...] = h.astype(o_ref.dtype)


def _ln_qkv_kernel(x_ref, g_ref, b_ref, wq_ref, bq_ref, wk_ref, bk_ref,
                   wv_ref, bv_ref, q_ref, k_ref, v_ref, xn_sc):
    """Fused LayerNorm -> three dense projections (Q, K, V) sharing one LN."""
    @pl.when(pl.program_id(1) == 0)
    def _():
        x = x_ref[...].astype(jnp.float32)
        mu = jnp.mean(x, axis=-1, keepdims=True)
        var = jnp.mean(jnp.square(x - mu), axis=-1, keepdims=True)
        xn = (x - mu) * jax.lax.rsqrt(var + 1e-5)
        xn = xn * g_ref[...].astype(jnp.float32) + b_ref[...].astype(jnp.float32)
        xn_sc[...] = xn.astype(jnp.bfloat16)

    xn = xn_sc[...]
    q_ref[...] = (jnp.dot(xn, wq_ref[...], preferred_element_type=jnp.float32)
                  + bq_ref[...].astype(jnp.float32)).astype(q_ref.dtype)
    k_ref[...] = (jnp.dot(xn, wk_ref[...], preferred_element_type=jnp.float32)
                  + bk_ref[...].astype(jnp.float32)).astype(k_ref.dtype)
    v_ref[...] = (jnp.dot(xn, wv_ref[...], preferred_element_type=jnp.float32)
                  + bv_ref[...].astype(jnp.float32)).astype(v_ref.dtype)


def _matmul_bias_kernel(x_ref, w_ref, bias_ref, o_ref, acc_ref):
    """K-accumulating tiled matmul: out = x @ w + bias."""
    @pl.when(pl.program_id(2) == 0)
    def _():
        acc_ref[...] = jnp.zeros_like(acc_ref)

    acc_ref[...] += jnp.dot(x_ref[...], w_ref[...],
                            preferred_element_type=jnp.float32)

    @pl.when(pl.program_id(2) == pl.num_programs(2) - 1)
    def _():
        o_ref[...] = (acc_ref[...]
                      + bias_ref[...].astype(jnp.float32)).astype(o_ref.dtype)


def _matmul_bias_residual_kernel(x_ref, w_ref, bias_ref, res_ref, o_ref, acc_ref):
    """K-accumulating tiled matmul with fused residual: out = x @ w + bias + res."""
    @pl.when(pl.program_id(2) == 0)
    def _():
        acc_ref[...] = jnp.zeros_like(acc_ref)

    acc_ref[...] += jnp.dot(x_ref[...], w_ref[...],
                            preferred_element_type=jnp.float32)

    @pl.when(pl.program_id(2) == pl.num_programs(2) - 1)
    def _():
        o_ref[...] = (acc_ref[...]
                      + bias_ref[...].astype(jnp.float32)
                      + res_ref[...].astype(jnp.float32)).astype(o_ref.dtype)


def _flash_attention_kernel(q_ref, k_ref, v_ref, pb_ref, o_ref,
                            m_sc, l_sc, acc_sc, *, dh, hpb, tq, tkv):
    """Online-softmax attention over a (batch, head_group, q_tile, kv_tile) grid.

    * hpb heads are processed per grid step (lane-dense blocks / output).
    * Fully-masked causal blocks are skipped; the causal iota/where is only
      generated for blocks straddling the diagonal.
    * The 1/sqrt(Dh) scale is pre-folded into the Q projection weights.
    * Output is written directly into (B, S, H) layout (lane-dense stores)."""
    ki = pl.program_id(3)

    @pl.when(ki == 0)
    def _():
        m_sc[...] = jnp.full_like(m_sc, -1e30)
        l_sc[...] = jnp.zeros_like(l_sc)
        acc_sc[...] = jnp.zeros_like(acc_sc)

    q_start = pl.program_id(2) * tq
    kv_start = ki * tkv
    pad_bias = pb_ref[0, :, :].astype(jnp.float32)           # (1, tkv) additive

    def _update(apply_causal):
        if apply_causal:
            q_pos = q_start + jax.lax.broadcasted_iota(jnp.int32, (tq, tkv), 0)
            k_pos = kv_start + jax.lax.broadcasted_iota(jnp.int32, (tq, tkv), 1)
            bias = pad_bias + jnp.where(q_pos >= k_pos, 0.0, -1e9)
        else:
            bias = pad_bias
        for h in range(hpb):                                  # unrolled, hpb small
            sl = slice(h * dh, (h + 1) * dh)
            q = q_ref[0, :, sl]                               # (tq, dh) bf16
            k = k_ref[0, :, sl]                               # (tkv, dh) bf16
            v = v_ref[0, :, sl]                               # (tkv, dh) bf16
            s = jax.lax.dot_general(q, k, (((1,), (1,)), ((), ())),
                                    preferred_element_type=jnp.float32)
            s = s + bias
            m_prev = m_sc[h]                                  # (tq, 1)
            m_new = jnp.maximum(m_prev, jnp.max(s, axis=-1, keepdims=True))
            alpha = jnp.exp(m_prev - m_new)
            p = jnp.exp(s - m_new)
            l_sc[h] = alpha * l_sc[h] + jnp.sum(p, axis=-1, keepdims=True)
            acc_sc[h] = alpha * acc_sc[h] + jnp.dot(
                p.astype(v.dtype), v, preferred_element_type=jnp.float32)
            m_sc[h] = m_new

    # fully visible (strictly below the causal diagonal): no mask needed
    @pl.when(kv_start + tkv - 1 <= q_start)
    def _():
        _update(False)

    # straddles the diagonal: apply the causal mask
    @pl.when(jnp.logical_and(kv_start <= q_start + tq - 1,
                             kv_start + tkv - 1 > q_start))
    def _():
        _update(True)

    # fully-masked blocks (kv_start > q_start + tq - 1) are skipped entirely.
    # TODO(synk): bound the kv grid per q-tile via scalar prefetch to also skip
    # the wasted k/v DMAs (predication only skips the compute).

    @pl.when(ki == pl.num_programs(3) - 1)
    def _():
        outs = []
        for h in range(hpb):
            inv_l = pl.reciprocal(l_sc[h], approx=True)
            outs.append(acc_sc[h] * inv_l)
        o_ref[0] = jnp.concatenate(outs, axis=-1).astype(o_ref.dtype)


# ----------------------------- kernel wrappers -----------------------------

def ln_matmul(x, gamma, beta, w, bias, *, gelu=False, out_dtype=jnp.bfloat16):
    """Fused LayerNorm + dense (+GELU). Grid (M, N); LN cached across N tiles."""
    M, K = x.shape
    N = w.shape[1]
    tm = _pick_tile(M, 1024, 16)
    tn = _pick_tile(N, 512, 128)
    kernel = functools.partial(_ln_matmul_kernel, gelu=gelu)
    return pl.pallas_call(
        kernel,
        out_shape=jax.ShapeDtypeStruct((M, N), out_dtype),
        grid=(M // tm, N // tn),
        in_specs=[
            pl.BlockSpec((tm, K), lambda i, j: (i, 0)),
            pl.BlockSpec((1, K), lambda i, j: (0, 0)),
            pl.BlockSpec((1, K), lambda i, j: (0, 0)),
            pl.BlockSpec((K, tn), lambda i, j: (0, j)),
            pl.BlockSpec((1, tn), lambda i, j: (0, j)),
        ],
        out_specs=pl.BlockSpec((tm, tn), lambda i, j: (i, j)),
        scratch_shapes=[pltpu.VMEM((tm, K), jnp.bfloat16)],
        compiler_params=pltpu.CompilerParams(
            dimension_semantics=("parallel", "arbitrary"),
            vmem_limit_bytes=_VMEM_LIMIT),
    )(x, gamma.reshape(1, K), beta.reshape(1, K), w, bias.reshape(1, N))


def ln_qkv(x, gamma, beta, wq, bq, wk, bk, wv, bv, *, out_dtype=jnp.bfloat16):
    """Fused LayerNorm -> Q/K/V projections; emits three (M, H) tensors."""
    M, K = x.shape
    N = wq.shape[1]
    tm = _pick_tile(M, 1024, 16)
    tn = _pick_tile(N, 512, 128)
    w_spec = pl.BlockSpec((K, tn), lambda i, j: (0, j))
    b_spec = pl.BlockSpec((1, tn), lambda i, j: (0, j))
    o_spec = pl.BlockSpec((tm, tn), lambda i, j: (i, j))
    o_shape = jax.ShapeDtypeStruct((M, N), out_dtype)
    return pl.pallas_call(
        _ln_qkv_kernel,
        out_shape=(o_shape, o_shape, o_shape),
        grid=(M // tm, N // tn),
        in_specs=[
            pl.BlockSpec((tm, K), lambda i, j: (i, 0)),
            pl.BlockSpec((1, K), lambda i, j: (0, 0)),
            pl.BlockSpec((1, K), lambda i, j: (0, 0)),
            w_spec, b_spec, w_spec, b_spec, w_spec, b_spec,
        ],
        out_specs=(o_spec, o_spec, o_spec),
        scratch_shapes=[pltpu.VMEM((tm, K), jnp.bfloat16)],
        compiler_params=pltpu.CompilerParams(
            dimension_semantics=("parallel", "arbitrary"),
            vmem_limit_bytes=_VMEM_LIMIT),
    )(x, gamma.reshape(1, K), beta.reshape(1, K),
      wq, bq.reshape(1, N), wk, bk.reshape(1, N), wv, bv.reshape(1, N))


def matmul_bias(x, w, bias, residual=None, *, out_dtype=jnp.bfloat16):
    """Tiled K-accumulating dense: out = x @ w + bias (+ residual)."""
    M, K = x.shape
    N = w.shape[1]
    tm = _pick_tile(M, 1024, 16)
    tn = _pick_tile(N, 512, 128)
    tk = _pick_tile(K, 512, 128)

    in_specs = [
        pl.BlockSpec((tm, tk), lambda i, j, k: (i, k)),
        pl.BlockSpec((tk, tn), lambda i, j, k: (k, j)),
        pl.BlockSpec((1, tn), lambda i, j, k: (0, j)),
    ]
    args = [x, w, bias.reshape(1, N)]
    if residual is not None:
        in_specs.append(pl.BlockSpec((tm, tn), lambda i, j, k: (i, j)))
        args.append(residual)
        kernel = _matmul_bias_residual_kernel
    else:
        kernel = _matmul_bias_kernel

    return pl.pallas_call(
        kernel,
        out_shape=jax.ShapeDtypeStruct((M, N), out_dtype),
        grid=(M // tm, N // tn, K // tk),
        in_specs=in_specs,
        out_specs=pl.BlockSpec((tm, tn), lambda i, j, k: (i, j)),
        scratch_shapes=[pltpu.VMEM((tm, tn), jnp.float32)],
        compiler_params=pltpu.CompilerParams(
            dimension_semantics=("parallel", "parallel", "arbitrary"),
            vmem_limit_bytes=_VMEM_LIMIT),
    )(*args)


def flash_attention(q, k, v, pad_bias, num_heads):
    """q, k, v: (B, S, H) bf16 head-packed projections; pad_bias: (B, 1, S) f32.
    Returns context in (B, S, H) layout (no transpose needed afterwards)."""
    B, S, H = q.shape
    dh = H // num_heads
    hpb = _heads_per_block(num_heads, dh)
    nhg = num_heads // hpb
    hb = hpb * dh
    tq = _pick_tile(S, 512, 16)
    tkv = _pick_tile(S, 512, 128)
    kernel = functools.partial(_flash_attention_kernel,
                               dh=dh, hpb=hpb, tq=tq, tkv=tkv)
    return pl.pallas_call(
        kernel,
        out_shape=jax.ShapeDtypeStruct((B, S, H), q.dtype),
        grid=(B, nhg, S // tq, S // tkv),
        in_specs=[
            pl.BlockSpec((1, tq, hb), lambda b, hg, qi, ki: (b, qi, hg)),
            pl.BlockSpec((1, tkv, hb), lambda b, hg, qi, ki: (b, ki, hg)),
            pl.BlockSpec((1, tkv, hb), lambda b, hg, qi, ki: (b, ki, hg)),
            pl.BlockSpec((1, 1, tkv), lambda b, hg, qi, ki: (b, 0, ki)),
        ],
        out_specs=pl.BlockSpec((1, tq, hb), lambda b, hg, qi, ki: (b, qi, hg)),
        scratch_shapes=[
            pltpu.VMEM((hpb, tq, 1), jnp.float32),    # running max m (per head)
            pltpu.VMEM((hpb, tq, 1), jnp.float32),    # running denom l
            pltpu.VMEM((hpb, tq, dh), jnp.float32),   # running numerator acc
        ],
        compiler_params=pltpu.CompilerParams(
            dimension_semantics=("parallel", "parallel", "parallel", "arbitrary"),
            vmem_limit_bytes=_VMEM_LIMIT),
    )(q, k, v, pad_bias)


# ----------------------------- GPT2 model glue -----------------------------

def transformer_block(p, h, pad_bias, num_heads):
    B, S, H = h.shape
    x = h.reshape(B * S, H)

    # fused LN -> Q/K/V projections (scale already folded into wq/bq)
    q_lin, k_lin, v_lin = ln_qkv(x, p["ln1_g"], p["ln1_b"],
                                 p["wq"], p["bq"], p["wk"], p["bk"],
                                 p["wv"], p["bv"])
    q_lin = q_lin.reshape(B, S, H)
    k_lin = k_lin.reshape(B, S, H)
    v_lin = v_lin.reshape(B, S, H)

    # flash attention reads head groups straight out of the (B, S, H) layout
    # and writes the context back in (B, S, H) layout -> no transposes.
    ctx = flash_attention(q_lin, k_lin, v_lin, pad_bias, num_heads)
    ctx = ctx.reshape(B * S, H)

    # attention output projection fused with residual add
    x = matmul_bias(ctx, p["proj_w"], p["proj_b"], residual=x)

    # fused LN -> fc -> GELU, then projection fused with residual add
    mlp = ln_matmul(x, p["ln2_g"], p["ln2_b"], p["fc_w"], p["fc_b"], gelu=True)
    x = matmul_bias(mlp, p["mlp_proj_w"], p["mlp_proj_b"], residual=x)
    return x.reshape(B, S, H)


def gpt2_sentiment_forward(params, input_ids, attention_mask, num_heads):
    B, S = input_ids.shape

    # TODO(synk): embedding gather stays as XLA glue.
    h = params["wte"][input_ids] + params["wpe"][jnp.arange(S)][None, :, :]
    h = h.astype(jnp.bfloat16)

    # additive key-padding bias (B, 1, S); the causal part is generated in-kernel
    pad_bias = ((1.0 - attention_mask.astype(jnp.float32)) * -1e9).reshape(B, 1, S)

    for layer_p in params["layers"]:
        h = transformer_block(layer_p, h, pad_bias, num_heads)

    # TODO(synk): last non-padded token gather stays as XLA glue.
    last_idx = jnp.sum(attention_mask.astype(jnp.int32), axis=1) - 1
    last_tokens = h[jnp.arange(B), last_idx].astype(jnp.float32)          # (B, H)

    # final LN + classifier on B rows x 5 labels: plain JAX (a Pallas call with
    # a 5-wide output last dim is pure launch overhead + masked stores).
    mu = jnp.mean(last_tokens, axis=-1, keepdims=True)
    var = jnp.mean(jnp.square(last_tokens - mu), axis=-1, keepdims=True)
    xn = (last_tokens - mu) * jax.lax.rsqrt(var + 1e-5)
    xn = xn * params["lnf_g"] + params["lnf_b"]
    # dropout is identity at inference (eval mode)
    logits = xn @ params["cls_w"].astype(jnp.float32) + params["cls_b"]
    return logits


# ----------------------------- parameter init -----------------------------

def init_params(key, vocab, max_pos, H, n_layers, num_labels, num_heads):
    std = 0.02
    wdt = jnp.bfloat16   # matmul weights stored bf16 (MXU inputs / HBM traffic)
    dh = H // num_heads
    scale = 1.0 / math.sqrt(dh)   # folded into the Q projection (weights + bias)
    ks = iter(jax.random.split(key, 4 + 8 * n_layers))
    nrm = lambda shape: (jax.random.normal(next(ks), shape, jnp.float32) * std)

    params = {
        "wte": nrm((vocab, H)),
        "wpe": nrm((max_pos, H)),
        "lnf_g": jnp.ones((H,), jnp.float32),
        "lnf_b": jnp.zeros((H,), jnp.float32),
        "cls_w": nrm((H, num_labels)).astype(wdt),
        "cls_b": jnp.zeros((num_labels,), jnp.float32),
        "layers": [],
    }
    for _ in range(n_layers):
        # NOTE: when loading real GPT-2 weights, split c_attn W (H, 3H) into
        # wq = W[:, :H] * scale, wk = W[:, H:2H], wv = W[:, 2H:], and scale bq.
        attn_w = nrm((H, 3 * H))
        params["layers"].append({
            "ln1_g": jnp.ones((H,), jnp.float32),
            "ln1_b": jnp.zeros((H,), jnp.float32),
            "wq": (attn_w[:, :H] * scale).astype(wdt),
            "bq": jnp.zeros((H,), jnp.float32) * scale,
            "wk": attn_w[:, H:2 * H].astype(wdt),
            "bk": jnp.zeros((H,), jnp.float32),
            "wv": attn_w[:, 2 * H:].astype(wdt),
            "bv": jnp.zeros((H,), jnp.float32),
            "proj_w": nrm((H, H)).astype(wdt),
            "proj_b": jnp.zeros((H,), jnp.float32),
            "ln2_g": jnp.ones((H,), jnp.float32),
            "ln2_b": jnp.zeros((H,), jnp.float32),
            "fc_w": nrm((H, 4 * H)).astype(wdt),
            "fc_b": jnp.zeros((4 * H,), jnp.float32),
            "mlp_proj_w": nrm((4 * H, H)).astype(wdt),
            "mlp_proj_b": jnp.zeros((H,), jnp.float32),
        })
    return params


# ----------------------------- main -----------------------------

if __name__ == "__main__":
    B, S = 2, 8
    VOCAB, MAX_POS = 50, 16
    H, NUM_HEADS, N_LAYERS = 32, 4, 2
    NUM_LABELS = 5

    key = jax.random.PRNGKey(0)
    k_param, k_ids = jax.random.split(key)

    params = init_params(k_param, VOCAB, MAX_POS, H, N_LAYERS, NUM_LABELS, NUM_HEADS)
    input_ids = jax.random.randint(k_ids, (B, S), 0, VOCAB, dtype=jnp.int32)
    attention_mask = jnp.array([[1, 1, 1, 1, 1, 1, 1, 1],
                                [1, 1, 1, 1, 1, 1, 0, 0]], dtype=jnp.int32)

    logits = gpt2_sentiment_forward(params, input_ids, attention_mask, NUM_HEADS)
    logits = jax.block_until_ready(logits)
    assert logits.shape == (B, NUM_LABELS) and logits.dtype == jnp.float32
    print("KERNEL_OK")
</pallas_src>

<mosaic_0001>
module attributes {stable_mosaic.version = 11 : i64} {
  func.func @_ln_qkv_kernel(%arg0: i32, %arg1: i32, %arg2: memref<16x32xbf16, #tpu.memory_space<vmem>>, %arg3: memref<1x32xf32, #tpu.memory_space<vmem>>, %arg4: memref<1x32xf32, #tpu.memory_space<vmem>>, %arg5: memref<32x32xbf16, #tpu.memory_space<vmem>>, %arg6: memref<1x32xf32, #tpu.memory_space<vmem>>, %arg7: memref<32x32xbf16, #tpu.memory_space<vmem>>, %arg8: memref<1x32xf32, #tpu.memory_space<vmem>>, %arg9: memref<32x32xbf16, #tpu.memory_space<vmem>>, %arg10: memref<1x32xf32, #tpu.memory_space<vmem>>, %arg11: memref<16x32xbf16, #tpu.memory_space<vmem>>, %arg12: memref<16x32xbf16, #tpu.memory_space<vmem>>, %arg13: memref<16x32xbf16, #tpu.memory_space<vmem>>, %arg14: memref<16x32xbf16, #tpu.memory_space<vmem>>) attributes {dimension_semantics = [#tpu.dimension_semantics<parallel>, #tpu.dimension_semantics<arbitrary>], iteration_bounds = array<i64: 1, 1>, scalar_prefetch = 0 : i64, scratch_operands = 1 : i64, tpu.core_type = #tpu.core_type<tc>, window_params = [{transform_indices = @transform_0, window_bounds = array<i64: 16, 32>}, {pipeline_mode = #tpu.pipeline_mode<synchronous>, transform_indices = @transform_1, window_bounds = array<i64: 1, 32>}, {pipeline_mode = #tpu.pipeline_mode<synchronous>, transform_indices = @transform_2, window_bounds = array<i64: 1, 32>}, {transform_indices = @transform_3, window_bounds = array<i64: 32, 32>}, {transform_indices = @transform_4, window_bounds = array<i64: 1, 32>}, {transform_indices = @transform_5, window_bounds = array<i64: 32, 32>}, {transform_indices = @transform_6, window_bounds = array<i64: 1, 32>}, {transform_indices = @transform_7, window_bounds = array<i64: 32, 32>}, {transform_indices = @transform_8, window_bounds = array<i64: 1, 32>}, {transform_indices = @transform_9, window_bounds = array<i64: 16, 32>}, {transform_indices = @transform_10, window_bounds = array<i64: 16, 32>}, {transform_indices = @transform_11, window_bounds = array<i64: 16, 32>}]} {
    %c0_i32 = arith.constant 0 : i32
    %0 = arith.cmpi eq, %arg1, %c0_i32 : i32
    %1 = arith.extui %0 : i1 to i32
    %c0_i32_0 = arith.constant 0 : i32
    %2 = arith.cmpi ne, %1, %c0_i32_0 : i32
    scf.if %2 {
      %c0_22 = arith.constant 0 : index
      %c0_23 = arith.constant 0 : index
      %25 = vector.load %arg2[%c0_22, %c0_23] : memref<16x32xbf16, #tpu.memory_space<vmem>>, vector<16x32xbf16>
      %26 = arith.extf %25 : vector<16x32xbf16> to vector<16x32xf32>
      %cst_24 = arith.constant dense<0.000000e+00> : vector<16xf32>
      %27 = vector.multi_reduction <add>, %26, %cst_24 [1] : vector<16x32xf32> to vector<16xf32>
      %28 = vector.shape_cast %27 : vector<16xf32> to vector<16x1xf32>
      %cst_25 = arith.constant 3.200000e+01 : f32
      %29 = vector.broadcast %cst_25 : f32 to vector<16x1xf32>
      %30 = arith.divf %28, %29 : vector<16x1xf32>
      %31 = vector.broadcast %30 : vector<16x1xf32> to vector<16x32xf32>
      %32 = arith.subf %26, %31 : vector<16x32xf32>
      %33 = arith.mulf %32, %32 : vector<16x32xf32>
      %cst_26 = arith.constant dense<0.000000e+00> : vector<16xf32>
      %34 = vector.multi_reduction <add>, %33, %cst_26 [1] : vector<16x32xf32> to vector<16xf32>
      %35 = vector.shape_cast %34 : vector<16xf32> to vector<16x1xf32>
      %cst_27 = arith.constant 3.200000e+01 : f32
      %36 = vector.broadcast %cst_27 : f32 to vector<16x1xf32>
      %37 = arith.divf %35, %36 : vector<16x1xf32>
      %38 = vector.broadcast %30 : vector<16x1xf32> to vector<16x32xf32>
      %39 = arith.subf %26, %38 : vector<16x32xf32>
      %cst_28 = arith.constant 9.99999974E-6 : f32
      %40 = vector.broadcast %cst_28 : f32 to vector<16x1xf32>
      %41 = arith.addf %37, %40 : vector<16x1xf32>
      %42 = math.rsqrt %41 : vector<16x1xf32>
      %43 = vector.broadcast %42 : vector<16x1xf32> to vector<16x32xf32>
      %44 = arith.mulf %39, %43 : vector<16x32xf32>
      %c0_29 = arith.constant 0 : index
      %c0_30 = arith.constant 0 : index
      %45 = vector.load %arg3[%c0_29, %c0_30] : memref<1x32xf32, #tpu.memory_space<vmem>>, vector<1x32xf32>
      %46 = vector.broadcast %45 : vector<1x32xf32> to vector<16x32xf32>
      %47 = arith.mulf %44, %46 : vector<16x32xf32>
      %c0_31 = arith.constant 0 : index
      %c0_32 = arith.constant 0 : index
      %48 = vector.load %arg4[%c0_31, %c0_32] : memref<1x32xf32, #tpu.memory_space<vmem>>, vector<1x32xf32>
      %49 = vector.broadcast %48 : vector<1x32xf32> to vector<16x32xf32>
      %50 = arith.addf %47, %49 : vector<16x32xf32>
      %51 = arith.truncf %50 : vector<16x32xf32> to vector<16x32xbf16>
      %c0_33 = arith.constant 0 : index
      %c0_34 = arith.constant 0 : index
      %52 = vector.load %arg14[%c0_33, %c0_34] : memref<16x32xbf16, #tpu.memory_space<vmem>>, vector<16x32xbf16>
      tpu.vector_store %arg14[%c0_33, %c0_34], %51 {strides = array<i32>} : memref<16x32xbf16, #tpu.memory_space<vmem>>, vector<16x32xbf16>,
    } else {
    }
    %c0 = arith.constant 0 : index
    %c0_1 = arith.constant 0 : index
    %3 = vector.load %arg14[%c0, %c0_1] : memref<16x32xbf16, #tpu.memory_space<vmem>>, vector<16x32xbf16>
    %c0_2 = arith.constant 0 : index
    %c0_3 = arith.constant 0 : index
    %4 = vector.load %arg5[%c0_2, %c0_3] : memref<32x32xbf16, #tpu.memory_space<vmem>>, vector<32x32xbf16>
    %cst = arith.constant dense<0.000000e+00> : vector<16x32xf32>
    %5 = tpu.matmul %3, %4, %cst {dimension_numbers = #tpu.dot_dimension_numbers<[1], [0], [0], [1], [0, 0, 1, 1], [], []>} : vector<16x32xbf16>, vector<32x32xbf16>, vector<16x32xf32> -> vector<16x32xf32>
    %c0_4 = arith.constant 0 : index
    %c0_5 = arith.constant 0 : index
    %6 = vector.load %arg6[%c0_4, %c0_5] : memref<1x32xf32, #tpu.memory_space<vmem>>, vector<1x32xf32>
    %7 = vector.broadcast %6 : vector<1x32xf32> to vector<16x32xf32>
    %8 = arith.addf %5, %7 : vector<16x32xf32>
    %9 = arith.truncf %8 : vector<16x32xf32> to vector<16x32xbf16>
    %c0_6 = arith.constant 0 : index
    %c0_7 = arith.constant 0 : index
    %10 = vector.load %arg11[%c0_6, %c0_7] : memref<16x32xbf16, #tpu.memory_space<vmem>>, vector<16x32xbf16>
    tpu.vector_store %arg11[%c0_6, %c0_7], %9 {strides = array<i32>} : memref<16x32xbf16, #tpu.memory_space<vmem>>, vector<16x32xbf16>,
    %c0_8 = arith.constant 0 : index
    %c0_9 = arith.constant 0 : index
    %11 = vector.load %arg7[%c0_8, %c0_9] : memref<32x32xbf16, #tpu.memory_space<vmem>>, vector<32x32xbf16>
    %cst_10 = arith.constant dense<0.000000e+00> : vector<16x32xf32>
    %12 = tpu.matmul %3, %11, %cst_10 {dimension_numbers = #tpu.dot_dimension_numbers<[1], [0], [0], [1], [0, 0, 1, 1], [], []>} : vector<16x32xbf16>, vector<32x32xbf16>, vector<16x32xf32> -> vector<16x32xf32>
    %c0_11 = arith.constant 0 : index
    %c0_12 = arith.constant 0 : index
    %13 = vector.load %arg8[%c0_11, %c0_12] : memref<1x32xf32, #tpu.memory_space<vmem>>, vector<1x32xf32>
    %14 = vector.broadcast %13 : vector<1x32xf32> to vector<16x32xf32>
    %15 = arith.addf %12, %14 : vector<16x32xf32>
    %16 = arith.truncf %15 : vector<16x32xf32> to vector<16x32xbf16>
    %c0_13 = arith.constant 0 : index
    %c0_14 = arith.constant 0 : index
    %17 = vector.load %arg12[%c0_13, %c0_14] : memref<16x32xbf16, #tpu.memory_space<vmem>>, vector<16x32xbf16>
    tpu.vector_store %arg12[%c0_13, %c0_14], %16 {strides = array<i32>} : memref<16x32xbf16, #tpu.memory_space<vmem>>, vector<16x32xbf16>,
    %c0_15 = arith.constant 0 : index
    %c0_16 = arith.constant 0 : index
    %18 = vector.load %arg9[%c0_15, %c0_16] : memref<32x32xbf16, #tpu.memory_space<vmem>>, vector<32x32xbf16>
    %cst_17 = arith.constant dense<0.000000e+00> : vector<16x32xf32>
    %19 = tpu.matmul %3, %18, %cst_17 {dimension_numbers = #tpu.dot_dimension_numbers<[1], [0], [0], [1], [0, 0, 1, 1], [], []>} : vector<16x32xbf16>, vector<32x32xbf16>, vector<16x32xf32> -> vector<16x32xf32>
    %c0_18 = arith.constant 0 : index
    %c0_19 = arith.constant 0 : index
    %20 = vector.load %arg10[%c0_18, %c0_19] : memref<1x32xf32, #tpu.memory_space<vmem>>, vector<1x32xf32>
    %21 = vector.broadcast %20 : vector<1x32xf32> to vector<16x32xf32>
    %22 = arith.addf %19, %21 : vector<16x32xf32>
    %23 = arith.truncf %22 : vector<16x32xf32> to vector<16x32xbf16>
    %c0_20 = arith.constant 0 : index
    %c0_21 = arith.constant 0 : index
    %24 = vector.load %arg13[%c0_20, %c0_21] : memref<16x32xbf16, #tpu.memory_space<vmem>>, vector<16x32xbf16>
    tpu.vector_store %arg13[%c0_20, %c0_21], %23 {strides = array<i32>} : memref<16x32xbf16, #tpu.memory_space<vmem>>, vector<16x32xbf16>,
    return
  }
  func.func @transform_0(%arg0: i32, %arg1: i32) -> (i32, i32) {
    %c0_i32 = arith.constant 0 : i32
    %c0_i32_0 = arith.constant 0 : i32
    return %arg0, %c0_i32 : i32, i32
  }
  func.func @transform_1(%arg0: i32, %arg1: i32) -> (i32, i32) {
    %c0_i32 = arith.constant 0 : i32
    %c0_i32_0 = arith.constant 0 : i32
    %c0_i32_1 = arith.constant 0 : i32
    return %c0_i32, %c0_i32_0 : i32, i32
  }
  func.func @transform_2(%arg0: i32, %arg1: i32) -> (i32, i32) {
    %c0_i32 = arith.constant 0 : i32
    %c0_i32_0 = arith.constant 0 : i32
    %c0_i32_1 = arith.constant 0 : i32
    return %c0_i32, %c0_i32_0 : i32, i32
  }
  func.func @transform_3(%arg0: i32, %arg1: i32) -> (i32, i32) {
    %c0_i32 = arith.constant 0 : i32
    %c0_i32_0 = arith.constant 0 : i32
    return %c0_i32, %arg1 : i32, i32
  }
  func.func @transform_4(%arg0: i32, %arg1: i32) -> (i32, i32) {
    %c0_i32 = arith.constant 0 : i32
    %c0_i32_0 = arith.constant 0 : i32
    return %c0_i32, %arg1 : i32, i32
  }
  func.func @transform_5(%arg0: i32, %arg1: i32) -> (i32, i32) {
    %c0_i32 = arith.constant 0 : i32
    %c0_i32_0 = arith.constant 0 : i32
    return %c0_i32, %arg1 : i32, i32
  }
  func.func @transform_6(%arg0: i32, %arg1: i32) -> (i32, i32) {
    %c0_i32 = arith.constant 0 : i32
    %c0_i32_0 = arith.constant 0 : i32
    return %c0_i32, %arg1 : i32, i32
  }
  func.func @transform_7(%arg0: i32, %arg1: i32) -> (i32, i32) {
    %c0_i32 = arith.constant 0 : i32
    %c0_i32_0 = arith.constant 0 : i32
    return %c0_i32, %arg1 : i32, i32
  }
  func.func @transform_8(%arg0: i32, %arg1: i32) -> (i32, i32) {
    %c0_i32 = arith.constant 0 : i32
    %c0_i32_0 = arith.constant 0 : i32
    return %c0_i32, %arg1 : i32, i32
  }
  func.func @transform_9(%arg0: i32, %arg1: i32) -> (i32, i32) {
    %c0_i32 = arith.constant 0 : i32
    return %arg0, %arg1 : i32, i32
  }
  func.func @transform_10(%arg0: i32, %arg1: i32) -> (i32, i32) {
    %c0_i32 = arith.constant 0 : i32
    return %arg0, %arg1 : i32, i32
  }
  func.func @transform_11(%arg0: i32, %arg1: i32) -> (i32, i32) {
    %c0_i32 = arith.constant 0 : i32
    return %arg0, %arg1 : i32, i32
  }
}

</mosaic_0001>

<llo_original>
// kernel: tpu_custom_call.1
$region0: #{tpu_custom_call.1}
  #allocation0 [shape = 'u32[]', space=smem, size = 0x4, offset = 0x4, fixed_abs, tag = 'smem constant byte address 0x4 - core index']
  #allocation1 [shape = 'u32[144,128]{1,0:T(1,128)}', space=vmem, size = 0x12000, scoped, tag = 'internal scratch']
  #allocation2 [shape = 'bf16[16,32]{1,0:T(8,128)(2,1)}', space=vmem, size = 0x1000, scoped, tag = 'scratch operand']
  %s0 = inlined_call_operand.hbm [shape: bf16[16,32], index: 0, kind: input, shape index: {}]
  %s1 = inlined_call_operand.vmem [shape: f32[1,32], index: 1, kind: input, shape index: {}]
  %s2 = inlined_call_operand.vmem [shape: f32[1,32], index: 2, kind: input, shape index: {}]
  %s3 = inlined_call_operand.hbm [shape: bf16[32,32], index: 3, kind: input, shape index: {}]
  %s4 = inlined_call_operand.vmem [shape: f32[1,32], index: 4, kind: input, shape index: {}]
  %s5 = inlined_call_operand.hbm [shape: bf16[32,32], index: 5, kind: input, shape index: {}]
  %s6 = inlined_call_operand.vmem [shape: f32[1,32], index: 6, kind: input, shape index: {}]
  %s7 = inlined_call_operand.hbm [shape: bf16[32,32], index: 7, kind: input, shape index: {}]
  %s8 = inlined_call_operand.vmem [shape: f32[1,32], index: 8, kind: input, shape index: {}]
  %s9 = inlined_call_operand.hbm [shape: bf16[16,32], index: 9, kind: output, shape index: {0}]
  %s10 = inlined_call_operand.hbm [shape: bf16[16,32], index: 10, kind: output, shape index: {1}]
  %s11 = inlined_call_operand.hbm [shape: bf16[16,32], index: 11, kind: output, shape index: {2}]
  %12 = xla_tuple %s9, %s10, %s11
  %s13 = sld [smem:[#allocation0]]
  $region82: #{tpu_custom_call.1} parent=0
    _
  %s15 = ssub.s32 1, %s13
  %s16 = scalar_select 0, %s15, %s13
  $region1: #{tpu_custom_call.1} parent=0
    #allocation3 [shape = 'u8[4096]{0}', space=vmem, size = 0x1000, scoped, tag = 'input window, operand 0, single buffered']
    #allocation4 [shape = 's32[1]{0}', space=sflag, size = 0x4, scoped, tag = 'scoped memory for tpu_custom_call.1']
    #allocation5 [shape = 's32[1]{0}', space=sflag, size = 0x4, scoped, tag = 'scoped memory for tpu_custom_call.1']
    #allocation6 [shape = 'u8[8192]{0}', space=vmem, size = 0x2000, scoped, tag = 'input window, operand 3, single buffered']
    #allocation7 [shape = 's32[1]{0}', space=sflag, size = 0x4, scoped, tag = 'scoped memory for tpu_custom_call.1']
    #allocation8 [shape = 'u8[8192]{0}', space=vmem, size = 0x2000, scoped, tag = 'input window, operand 5, single buffered']
    #allocation9 [shape = 'u8[8192]{0}', space=vmem, size = 0x2000, scoped, tag = 'input window, operand 7, single buffered']
    #allocation10 [shape = 's32[1]{0}', space=sflag, size = 0x4, scoped, tag = 'scoped memory for tpu_custom_call.1']
    #allocation11 [shape = 'u8[4096]{0}', space=vmem, size = 0x1000, scoped, tag = 'output window, operand 0, single buffered']
    #allocation12 [shape = 'u8[4096]{0}', space=vmem, size = 0x1000, scoped, tag = 'output window, operand 1, single buffered']
    #allocation13 [shape = 's32[1]{0}', space=sflag, size = 0x4, scoped, tag = 'scoped memory for tpu_custom_call.1']
    #allocation14 [shape = 'u8[4096]{0}', space=vmem, size = 0x1000, scoped, tag = 'output window, operand 2, single buffered']
    %17 = vsyncpa [#allocation4], 0
    %18 = vsyncpa [#allocation7], 0
    %19 = vsyncpa [#allocation10], 0
    %20 = vsyncpa [#allocation5], 0
    %21 = vsyncpa [#allocation13], 0
    // Predicated region
    $region2: #{tpu_custom_call.1} parent=1 // pred_check
      _
    $region3: #{tpu_custom_call.1} parent=1 // pred_check_branch
      %23 = sbr.rel (0) target = $region5
    $region4: #{tpu_custom_call.1} parent=1 // pred_region
      %s25 = ssub.s32 128, 128
      %26 = vsyncadd [#allocation4], %s25
      %s27 = sshll.u32 [#allocation3], 4
      %s28 = int_to_ptr.vmem [resolvable:$true] %s27
      %33 = dma.hbm_to_vmem [thread:$0]  %s0, 128, %s28, [#allocation4], 64, 64, 4
    $region5: #{tpu_custom_call.1} parent=1 // pred_fallthru
      _
    // Predicated region
    $region6: #{tpu_custom_call.1} parent=1 // pred_check
      _
    $region7: #{tpu_custom_call.1} parent=1 // pred_check_branch
      %35 = sbr.rel (0) target = $region9
    $region8: #{tpu_custom_call.1} parent=1 // pred_region
      _
    $region9: #{tpu_custom_call.1} parent=1 // pred_fallthru
      _
    // Predicated region
    $region10: #{tpu_custom_call.1} parent=1 // pred_check
      _
    $region11: #{tpu_custom_call.1} parent=1 // pred_check_branch
      %37 = sbr.rel (0) target = $region13
    $region12: #{tpu_custom_call.1} parent=1 // pred_region
      _
    $region13: #{tpu_custom_call.1} parent=1 // pred_fallthru
      _
    // Predicated region
    $region14: #{tpu_custom_call.1} parent=1 // pred_check
      _
    $region15: #{tpu_custom_call.1} parent=1 // pred_check_branch
      %39 = sbr.rel (0) target = $region17
    $region16: #{tpu_custom_call.1} parent=1 // pred_region
      %s41 = ssub.s32 256, 256
      %42 = vsyncadd [#allocation7], %s41
      %s43 = sshll.u32 [#allocation6], 4
      %s44 = int_to_ptr.vmem [resolvable:$true] %s43
      %49 = dma.hbm_to_vmem [thread:$0]  %s3, 256, %s44, [#allocation7], 64, 64, 4
    $region17: #{tpu_custom_call.1} parent=1 // pred_fallthru
      _
    // Predicated region
    $region18: #{tpu_custom_call.1} parent=1 // pred_check
      _
    $region19: #{tpu_custom_call.1} parent=1 // pred_check_branch
      %51 = sbr.rel (0) target = $region21
    $region20: #{tpu_custom_call.1} parent=1 // pred_region
      _
    $region21: #{tpu_custom_call.1} parent=1 // pred_fallthru
      _
    // Predicated region
    $region22: #{tpu_custom_call.1} parent=1 // pred_check
      _
    $region23: #{tpu_custom_call.1} parent=1 // pred_check_branch
      %53 = sbr.rel (0) target = $region25
    $region24: #{tpu_custom_call.1} parent=1 // pred_region
      %s55 = ssub.s32 256, 256
      %56 = vsyncadd [#allocation7], %s55
      %s57 = sshll.u32 [#allocation8], 4
      %s58 = int_to_ptr.vmem [resolvable:$true] %s57
      %63 = dma.hbm_to_vmem [thread:$0]  %s5, 256, %s58, [#allocation7], 64, 64, 4
    $region25: #{tpu_custom_call.1} parent=1 // pred_fallthru
      _
    // Predicated region
    $region26: #{tpu_custom_call.1} parent=1 // pred_check
      _
    $region27: #{tpu_custom_call.1} parent=1 // pred_check_branch
      %65 = sbr.rel (0) target = $region29
    $region28: #{tpu_custom_call.1} parent=1 // pred_region
      _
    $region29: #{tpu_custom_call.1} parent=1 // pred_fallthru
      _
    // Predicated region
    $region30: #{tpu_custom_call.1} parent=1 // pred_check
      _
    $region31: #{tpu_custom_call.1} parent=1 // pred_check_branch
      %67 = sbr.rel (0) target = $region33
    $region32: #{tpu_custom_call.1} parent=1 // pred_region
      %s69 = ssub.s32 256, 256
      %70 = vsyncadd [#allocation10], %s69
      %s71 = sshll.u32 [#allocation9], 4
      %s72 = int_to_ptr.vmem [resolvable:$true] %s71
      %77 = dma.hbm_to_vmem [thread:$0]  %s7, 256, %s72, [#allocation10], 64, 64, 4
    $region33: #{tpu_custom_call.1} parent=1 // pred_fallthru
      _
    // Predicated region
    $region34: #{tpu_custom_call.1} parent=1 // pred_check
      _
    $region35: #{tpu_custom_call.1} parent=1 // pred_check_branch
      %79 = sbr.rel (0) target = $region37
    $region36: #{tpu_custom_call.1} parent=1 // pred_region
      _
    $region37: #{tpu_custom_call.1} parent=1 // pred_fallthru
      _
    // Predicated region
    $region38: #{tpu_custom_call.1} parent=1 // pred_check
      _
    $region39: #{tpu_custom_call.1} parent=1 // pred_check_branch
      %81 = sbr.rel (0) target = $region41
    $region40: #{tpu_custom_call.1} parent=1 // pred_region
      %82 = dma.done [#allocation4], 128
    $region41: #{tpu_custom_call.1} parent=1 // pred_fallthru
      _
    // Predicated region
    $region42: #{tpu_custom_call.1} parent=1 // pred_check
      _
    $region43: #{tpu_custom_call.1} parent=1 // pred_check_branch
      %84 = sbr.rel (0) target = $region45
    $region44: #{tpu_custom_call.1} parent=1 // pred_region
      %85 = dma.done [#allocation7], 256
    $region45: #{tpu_custom_call.1} parent=1 // pred_fallthru
      _
    // Predicated region
    $region46: #{tpu_custom_call.1} parent=1 // pred_check
      _
    $region47: #{tpu_custom_call.1} parent=1 // pred_check_branch
      %87 = sbr.rel (0) target = $region49
    $region48: #{tpu_custom_call.1} parent=1 // pred_region
      %88 = dma.done [#allocation7], 256
    $region49: #{tpu_custom_call.1} parent=1 // pred_fallthru
      _
    // Predicated region
    $region50: #{tpu_custom_call.1} parent=1 // pred_check
      _
    $region51: #{tpu_custom_call.1} parent=1 // pred_check_branch
      %90 = sbr.rel (0) target = $region53
    $region52: #{tpu_custom_call.1} parent=1 // pred_region
      %91 = dma.done [#allocation10], 256
    $region53: #{tpu_custom_call.1} parent=1 // pred_fallthru
      _
    %p93 = scmp.eq.s32.totalorder 0, 0
    // Predicated region
    $region54: #{tpu_custom_call.1} parent=1 // pred_check
      %p94 = pneg %p93
    $region55: #{tpu_custom_call.1} parent=1 // pred_check_branch
      %96 = sbr.rel (%p94) target = $region57
    $region56: #{tpu_custom_call.1} parent=1 // pred_region
      %v97 = vld [vmem:[#allocation3] sm:$0xf]
      %v98 = vld [vmem:[#allocation3 + $0x4] sm:$0xf]
      %v99 = vunpack.c.l.bf16 %v97
      %v100 = vunpack.c.l.bf16 %v98
      %vm101 = vcmask 261120
      %v102 = vsel %vm101, %v99, 0.0
      %103 = vadd.xlane.f32.xlu0 %v102
      %v104 = vpop.xlane.xlu0 %103
      %v105 = vsel %vm101, %v100, 0.0
      %106 = vadd.xlane.f32.xlu0 %v105
      %v107 = vpop.xlane.xlu0 %106
      %v108 = vrcp.pop 32.0
      %v109 = vmul.f32 %v104, %v108
      %v110 = vmul.f32 %v107, %v108
      %v111 = vsub.f32 %v99, %v109
      %v112 = vsub.f32 %v100, %v110
      %v113 = vmul.f32 %v111, %v111
      %v114 = vmul.f32 %v112, %v112
      %v115 = vsel %vm101, %v113, 0.0
      %116 = vadd.xlane.f32.xlu0 %v115
      %v117 = vpop.xlane.xlu0 %116
      %v118 = vsel %vm101, %v114, 0.0
      %119 = vadd.xlane.f32.xlu0 %v118
      %v120 = vpop.xlane.xlu0 %119
      %v121 = vmul.f32 %v117, %v108
      %v122 = vmul.f32 %v120, %v108
      %v123 = vadd.f32 %v121, 1e-05
      %v124 = vadd.f32 %v122, 1e-05
      %v125 = vrsqrt.pop %v123
      %v126 = vrsqrt.pop %v124
      %v127 = vmul.f32 %v111, %v125
      %v128 = vmul.f32 %v112, %v126
      %v129 = vld [vmem:[%s1] sm:$0x1]
      %v131 = vlaneseq
      %v132 = vshrl.u32 %v131, 7
      %v133 = vsub.s32 0, %v132
      %v134 = vrot.slane %v129, %v133
      %v136 = vmul.f32 %v127, %v134
      %v137 = vmul.f32 %v128, %v134
      %v138 = vld [vmem:[%s2] sm:$0x1]
      %v140 = vlaneseq
      %v141 = vshrl.u32 %v140, 7
      %v142 = vsub.s32 0, %v141
      %v143 = vrot.slane %v138, %v142
      %v145 = vadd.f32 %v136, %v143
      %v146 = vadd.f32 %v137, %v143
      %v147 = vpack.c.bf16 %v146, %v145
      %v149 = vunpack.c.l.b16 %v147
      %v150 = vunpack.c.h.b16 %v147
      %v151 = vpack.c.b16 %v149, %v149
      %v152 = vpack.c.b16 %v150, %v150
      %vm155 = vcmask 257024
      %156 = vst.msk [vmem:[#allocation2] sm:$0xf] %vm155, %v151
      %157 = vst.msk [vmem:[#allocation2 + $0x4] sm:$0xf] %vm155, %v152
    $region57: #{tpu_custom_call.1} parent=1 // pred_fallthru
      _
    %v158 = vld [vmem:[#allocation2] sm:$0xf]
    %v159 = vld [vmem:[#allocation2 + $0x4] sm:$0xf]
    %v160 = vld [vmem:[#allocation6] sm:$0xf]
    %v161 = vld [vmem:[#allocation6 + $0x4] sm:$0xf]
    %v162 = vld [vmem:[#allocation6 + $0x8] sm:$0xf]
    %v163 = vld [vmem:[#allocation6 + $0xc] sm:$0xf]
    %v164 = vld [vmem:[%s4] sm:$0x1]
    %v166 = vlaneseq
    %v167 = vshrl.u32 %v166, 7
    %v168 = vsub.s32 0, %v167
    %v169 = vrot.slane %v164, %v168
    %v173 = vunpack.c.l.b16 %v158
    %v174 = vunpack.c.l.b16 %v159
    %v175 = vpack.c.b16 %v174, %v173
    %v180 = vunpack.c.l.b16 %v160
    %v181 = vunpack.c.l.b16 %v161
    %v182 = vunpack.c.l.b16 %v162
    %v183 = vunpack.c.l.b16 %v163
    %v184 = vpack.c.b16 %v181, %v180
    %v185 = vpack.c.b16 %v183, %v182
    %vm188 = vcmask 261120
    %v190 = vsel %vm188, %v175, 0
    %192 = vmatprep.subr.bf16.mxu0 0
    %193 = vmatpush1.bf16.msra.mxu0 0
    %194 = vmatprep.subr.bf16.mxu0 0
    %195 = vmatpush1.bf16.msra.mxu0 0
    %196 = vmatprep.subr.bf16.mxu0 0
    %197 = vmatpush1.bf16.msra.mxu0 0
    %198 = vmatprep.subr.bf16.mxu0 0
    %199 = vmatpush1.bf16.msra.mxu0 0
    %200 = vmatprep.subr.bf16.mxu0 0
    %201 = vmatpush1.bf16.msra.mxu0 0
    %202 = vmatprep.subr.bf16.mxu0 0
    %203 = vmatpush1.bf16.msra.mxu0 0
    %204 = vmatprep.subr.bf16.mxu0 0
    %205 = vmatpush1.bf16.msra.mxu0 %v185
    %206 = vmatprep.subr.bf16.mxu0 0
    %207 = vmatpush1.bf16.msra.mxu0 %v184
    %208 = vmatprep.subr.bf16.mxu0 0
    %209 = vmatpush2.bf16.msra.mxu0 0
    %210 = vmatprep.subr.bf16.mxu0 0
    %211 = vmatpush2.bf16.msra.mxu0 0
    %212 = vmatprep.subr.bf16.mxu0 0
    %213 = vmatpush2.bf16.msra.mxu0 0
    %214 = vmatprep.subr.bf16.mxu0 0
    %215 = vmatpush2.bf16.msra.mxu0 0
    %216 = vmatprep.subr.bf16.mxu0 0
    %217 = vmatpush2.bf16.msra.mxu0 0
    %218 = vmatprep.subr.bf16.mxu0 0
    %219 = vmatpush2.bf16.msra.mxu0 0
    %220 = vmatprep.subr.bf16.mxu0 0
    %221 = vmatpush2.bf16.msra.mxu0 0
    %222 = vmatprep.subr.bf16.mxu0 0
    %223 = vmatpush2.bf16.msra.mxu0 0
    %224 = vmatprep.mubr.bf16.mxu0 0
    %225 = vmatmul.mubr.bf16.gmra.mxu0 %v190
    %v226 = vpop.f32.mrf.mxu0
    %v227 = vadd.f32 %v169, %v226
    %v228 = vpop.f32.mrf.mxu0
    %v229 = vpop.f32.mrf.mxu0
    %v230 = vadd.f32 %v169, %v229
    %v231 = vpop.f32.mrf.mxu0
    %232 = vdwg.mxu0
    %v233 = vpack.c.bf16 %v230, %v227
    %v235 = vunpack.c.l.b16 %v233
    %v236 = vunpack.c.h.b16 %v233
    %v237 = vpack.c.b16 %v235, %v235
    %v238 = vpack.c.b16 %v236, %v236
    %vm241 = vcmask 257024
    %242 = vst.msk [vmem:[#allocation11] sm:$0xf] %vm241, %v237
    %243 = vst.msk [vmem:[#allocation11 + $0x4] sm:$0xf] %vm241, %v238
    %v244 = vld [vmem:[#allocation8] sm:$0xf]
    %v245 = vld [vmem:[#allocation8 + $0x4] sm:$0xf]
    %v246 = vld [vmem:[#allocation8 + $0x8] sm:$0xf]
    %v247 = vld [vmem:[#allocation8 + $0xc] sm:$0xf]
    %v248 = vld [vmem:[%s6] sm:$0x1]
    %v250 = vlaneseq
    %v251 = vshrl.u32 %v250, 7
    %v252 = vsub.s32 0, %v251
    %v253 = vrot.slane %v248, %v252
    %v259 = vunpack.c.l.b16 %v244
    %v260 = vunpack.c.l.b16 %v245
    %v261 = vunpack.c.l.b16 %v246
    %v262 = vunpack.c.l.b16 %v247
    %v263 = vpack.c.b16 %v260, %v259
    %v264 = vpack.c.b16 %v262, %v261
    %267 = vmatprep.subr.bf16.mxu0 0
    %268 = vmatpush1.bf16.msra.mxu0 0
    %269 = vmatprep.subr.bf16.mxu0 0
    %270 = vmatpush1.bf16.msra.mxu0 0
    %271 = vmatprep.subr.bf16.mxu0 0
    %272 = vmatpush1.bf16.msra.mxu0 0
    %273 = vmatprep.subr.bf16.mxu0 0
    %274 = vmatpush1.bf16.msra.mxu0 0
    %275 = vmatprep.subr.bf16.mxu0 0
    %276 = vmatpush1.bf16.msra.mxu0 0
    %277 = vmatprep.subr.bf16.mxu0 0
    %278 = vmatpush1.bf16.msra.mxu0 0
    %279 = vmatprep.subr.bf16.mxu0 0
    %280 = vmatpush1.bf16.msra.mxu0 %v264
    %281 = vmatprep.subr.bf16.mxu0 0
    %282 = vmatpush1.bf16.msra.mxu0 %v263
    %283 = vmatprep.subr.bf16.mxu0 0
    %284 = vmatpush2.bf16.msra.mxu0 0
    %285 = vmatprep.subr.bf16.mxu0 0
    %286 = vmatpush2.bf16.msra.mxu0 0
    %287 = vmatprep.subr.bf16.mxu0 0
    %288 = vmatpush2.bf16.msra.mxu0 0
    %289 = vmatprep.subr.bf16.mxu0 0
    %290 = vmatpush2.bf16.msra.mxu0 0
    %291 = vmatprep.subr.bf16.mxu0 0
    %292 = vmatpush2.bf16.msra.mxu0 0
    %293 = vmatprep.subr.bf16.mxu0 0
    %294 = vmatpush2.bf16.msra.mxu0 0
    %295 = vmatprep.subr.bf16.mxu0 0
    %296 = vmatpush2.bf16.msra.mxu0 0
    %297 = vmatprep.subr.bf16.mxu0 0
    %298 = vmatpush2.bf16.msra.mxu0 0
    %299 = vmatprep.mubr.bf16.mxu0 0
    %300 = vmatmul.mubr.bf16.gmra.mxu0 %v190
    %v301 = vpop.f32.mrf.mxu0
    %v302 = vadd.f32 %v253, %v301
    %v303 = vpop.f32.mrf.mxu0
    %v304 = vpop.f32.mrf.mxu0
    %v305 = vadd.f32 %v253, %v304
    %v306 = vpop.f32.mrf.mxu0
    %307 = vdwg.mxu0
    %v308 = vpack.c.bf16 %v305, %v302
    %v310 = vunpack.c.l.b16 %v308
    %v311 = vunpack.c.h.b16 %v308
    %v312 = vpack.c.b16 %v310, %v310
    %v313 = vpack.c.b16 %v311, %v311
    %316 = vst.msk [vmem:[#allocation12] sm:$0xf] %vm241, %v312
    %317 = vst.msk [vmem:[#allocation12 + $0x4] sm:$0xf] %vm241, %v313
    %v318 = vld [vmem:[#allocation9] sm:$0xf]
    %v319 = vld [vmem:[#allocation9 + $0x4] sm:$0xf]
    %v320 = vld [vmem:[#allocation9 + $0x8] sm:$0xf]
    %v321 = vld [vmem:[#allocation9 + $0xc] sm:$0xf]
    %v322 = vld [vmem:[%s8] sm:$0x1]
    %v324 = vlaneseq
    %v325 = vshrl.u32 %v324, 7
    %v326 = vsub.s32 0, %v325
    %v327 = vrot.slane %v322, %v326
    %v333 = vunpack.c.l.b16 %v318
    %v334 = vunpack.c.l.b16 %v319
    %v335 = vunpack.c.l.b16 %v320
    %v336 = vunpack.c.l.b16 %v321
    %v337 = vpack.c.b16 %v334, %v333
    %v338 = vpack.c.b16 %v336, %v335
    %341 = vmatprep.subr.bf16.mxu0 0
    %342 = vmatpush1.bf16.msra.mxu0 0
    %343 = vmatprep.subr.bf16.mxu0 0
    %344 = vmatpush1.bf16.msra.mxu0 0
    %345 = vmatprep.subr.bf16.mxu0 0
    %346 = vmatpush1.bf16.msra.mxu0 0
    %347 = vmatprep.subr.bf16.mxu0 0
    %348 = vmatpush1.bf16.msra.mxu0 0
    %349 = vmatprep.subr.bf16.mxu0 0
    %350 = vmatpush1.bf16.msra.mxu0 0
    %351 = vmatprep.subr.bf16.mxu0 0
    %352 = vmatpush1.bf16.msra.mxu0 0
    %353 = vmatprep.subr.bf16.mxu0 0
    %354 = vmatpush1.bf16.msra.mxu0 %v338
    %355 = vmatprep.subr.bf16.mxu0 0
    %356 = vmatpush1.bf16.msra.mxu0 %v337
    %357 = vmatprep.subr.bf16.mxu0 0
    %358 = vmatpush2.bf16.msra.mxu0 0
    %359 = vmatprep.subr.bf16.mxu0 0
    %360 = vmatpush2.bf16.msra.mxu0 0
    %361 = vmatprep.subr.bf16.mxu0 0
    %362 = vmatpush2.bf16.msra.mxu0 0
    %363 = vmatprep.subr.bf16.mxu0 0
    %364 = vmatpush2.bf16.msra.mxu0 0
    %365 = vmatprep.subr.bf16.mxu0 0
    %366 = vmatpush2.bf16.msra.mxu0 0
    %367 = vmatprep.subr.bf16.mxu0 0
    %368 = vmatpush2.bf16.msra.mxu0 0
    %369 = vmatprep.subr.bf16.mxu0 0
    %370 = vmatpush2.bf16.msra.mxu0 0
    %371 = vmatprep.subr.bf16.mxu0 0
    %372 = vmatpush2.bf16.msra.mxu0 0
    %373 = vmatprep.mubr.bf16.mxu0 0
    %374 = vmatmul.mubr.bf16.gmra.mxu0 %v190
    %v375 = vpop.f32.mrf.mxu0
    %v376 = vadd.f32 %v327, %v375
    %v377 = vpop.f32.mrf.mxu0
    %v378 = vpop.f32.mrf.mxu0
    %v379 = vadd.f32 %v327, %v378
    %v380 = vpop.f32.mrf.mxu0
    %381 = vdwg.mxu0
    %v382 = vpack.c.bf16 %v379, %v376
    %v384 = vunpack.c.l.b16 %v382
    %v385 = vunpack.c.h.b16 %v382
    %v386 = vpack.c.b16 %v384, %v384
    %v387 = vpack.c.b16 %v385, %v385
    %390 = vst.msk [vmem:[#allocation14] sm:$0xf] %vm241, %v386
    %391 = vst.msk [vmem:[#allocation14 + $0x4] sm:$0xf] %vm241, %v387
    // Predicated region
    $region58: #{tpu_custom_call.1} parent=1 // pred_check
      _
    $region59: #{tpu_custom_call.1} parent=1 // pred_check_branch
      %393 = sbr.rel (0) target = $region61
    $region60: #{tpu_custom_call.1} parent=1 // pred_region
      %s395 = ssub.s32 128, 128
      %396 = vsyncadd [#allocation5], %s395
      %s397 = sshll.u32 [#allocation11], 4
      %s398 = int_to_ptr.vmem [resolvable:$true] %s397
      %403 = dma.vmem_to_hbm [thread:$0]  %s398, 128, %s9, [#allocation5], 64, 64, 4
    $region61: #{tpu_custom_call.1} parent=1 // pred_fallthru
      _
    // Predicated region
    $region62: #{tpu_custom_call.1} parent=1 // pred_check
      _
    $region63: #{tpu_custom_call.1} parent=1 // pred_check_branch
      %405 = sbr.rel (0) target = $region65
    $region64: #{tpu_custom_call.1} parent=1 // pred_region
      %s407 = ssub.s32 128, 128
      %408 = vsyncadd [#allocation13], %s407
      %s409 = sshll.u32 [#allocation12], 4
      %s410 = int_to_ptr.vmem [resolvable:$true] %s409
      %415 = dma.vmem_to_hbm [thread:$0]  %s410, 128, %s10, [#allocation13], 64, 64, 4
    $region65: #{tpu_custom_call.1} parent=1 // pred_fallthru
      _
    // Predicated region
    $region66: #{tpu_custom_call.1} parent=1 // pred_check
      _
    $region67: #{tpu_custom_call.1} parent=1 // pred_check_branch
      %417 = sbr.rel (0) target = $region69
    $region68: #{tpu_custom_call.1} parent=1 // pred_region
      %s419 = ssub.s32 128, 128
      %420 = vsyncadd [#allocation13], %s419
      %s421 = sshll.u32 [#allocation14], 4
      %s422 = int_to_ptr.vmem [resolvable:$true] %s421
      %427 = dma.vmem_to_hbm [thread:$0]  %s422, 128, %s11, [#allocation13], 64, 64, 4
    $region69: #{tpu_custom_call.1} parent=1 // pred_fallthru
      _
    // Predicated region
    $region70: #{tpu_custom_call.1} parent=1 // pred_check
      _
    $region71: #{tpu_custom_call.1} parent=1 // pred_check_branch
      %429 = sbr.rel (0) target = $region73
    $region72: #{tpu_custom_call.1} parent=1 // pred_region
      %430 = dma.done [#allocation5], 128
    $region73: #{tpu_custom_call.1} parent=1 // pred_fallthru
      _
    // Predicated region
    $region74: #{tpu_custom_call.1} parent=1 // pred_check
      _
    $region75: #{tpu_custom_call.1} parent=1 // pred_check_branch
      %432 = sbr.rel (0) target = $region77
    $region76: #{tpu_custom_call.1} parent=1 // pred_region
      %433 = dma.done [#allocation13], 128
    $region77: #{tpu_custom_call.1} parent=1 // pred_fallthru
      _
    // Predicated region
    $region78: #{tpu_custom_call.1} parent=1 // pred_check
      _
    $region79: #{tpu_custom_call.1} parent=1 // pred_check_branch
      %435 = sbr.rel (0) target = $region81
    $region80: #{tpu_custom_call.1} parent=1 // pred_region
      %436 = dma.done [#allocation13], 128
    $region81: #{tpu_custom_call.1} parent=1 // pred_fallthru
      _
    %437 = vsyncpa [#allocation4], 1
    %438 = vsyncpa [#allocation7], 1
    %439 = vsyncpa [#allocation10], 1
    %440 = vsyncpa [#allocation5], 1
    %441 = vsyncpa [#allocation13], 1

</llo_original>
